<compile_context>
chip_gen: v7x
topology: tpu7x:2x2x1
jax: 0.10.0
libtpu: 0.0.40
codegen_flags: <defaults>
</compile_context>

<pallas_src>
import functools

import jax
import jax.numpy as jnp
from jax.experimental import pallas as pl
from jax.experimental.pallas import tpu as pltpu

# ---- model hyper-parameters (consistent with the PyTorch module) ----
HISTORY_WINDOW = 8          # args.history_window  -> seq length L
INPUT_DIM = 4               # input_dim            -> C_in
HIDDEN_DIM = 32             # hidden_dim           -> H
OUTPUT_DIM = 8              # output_dim           -> O
KERNEL = 2                  # conv kernel size
STRIDE = 1                  # conv stride
L_OUT = (HISTORY_WINDOW - KERNEL) // STRIDE + 1   # = 7; MaxPool1d kernel == L_OUT

FLAT_IN = HISTORY_WINDOW * INPUT_DIM              # 32  per-sample flattened width
WIN = KERNEL * INPUT_DIM                          # 8   one conv window, flattened
FUSED_N = L_OUT * HIDDEN_DIM                      # 224 fused conv output width

MAX_BLOCK_B = 4096          # max samples per grid step (y scratch ~3.7 MB f32, << VMEM)
BLOCK_ALIGN = 256           # block-size granularity


def _round_up(x, m):
    return (x + m - 1) // m * m


def _choose_block_b(b):
    """Samples per grid step: large enough to amortize the ~0.35us step overhead,
    but >= 2 (even) blocks so the 'parallel' axis can feed both v7x TensorCores."""
    if b <= BLOCK_ALIGN:
        return BLOCK_ALIGN
    n_blocks = max(2, pl.cdiv(b, MAX_BLOCK_B))
    n_blocks += n_blocks % 2                       # even number of blocks
    return min(MAX_BLOCK_B, _round_up(pl.cdiv(b, n_blocks), BLOCK_ALIGN))


def cnn_forward_kernel(x_ref, wc_ref, bc_ref, wf_ref, bf_ref, o_ref):
    """Forward for one block of independent samples; all operands resident in VMEM."""
    # All L_OUT conv positions in ONE MXU matmul against the block-banded fused
    # weight: column group l (width H) holds the conv output at position l.
    y = jnp.dot(x_ref[...], wc_ref[...],
                preferred_element_type=jnp.float32)           # (B, L_OUT*H) f32

    # MaxPool1d over the whole conv length == max over the L_OUT column groups.
    # Balanced tree (depth 3, not 7) to shorten the VALU dependency chain.
    parts = [y[:, l * HIDDEN_DIM:(l + 1) * HIDDEN_DIM] for l in range(L_OUT)]
    while len(parts) > 1:
        nxt = [jnp.maximum(parts[i], parts[i + 1])
               for i in range(0, len(parts) - 1, 2)]
        if len(parts) % 2:
            nxt.append(parts[-1])
        parts = nxt
    pooled = parts[0]                                         # (B, H) f32

    # Bias + ReLU once, after the max (exact: relu(.+b) is monotone).
    act = jnp.maximum(pooled + bc_ref[...], 0.0)              # (B, H) f32

    # Linear head.
    o_ref[...] = (
        jnp.dot(act.astype(jnp.bfloat16), wf_ref[...],
                preferred_element_type=jnp.float32)
        + bf_ref[...]
    )


def prepare_params(conv_w, conv_b, fc_w, fc_b):
    """One-time conversion of PyTorch-layout parameters to kernel layout/dtype.

    conv_w: (H, C_in, K)  nn.Conv1d.weight
    conv_b: (H,)          nn.Conv1d.bias
    fc_w  : (O, H)        nn.Linear.weight
    fc_b  : (O,)          nn.Linear.bias
    """
    # Per-window fused conv weight: wc[k*C_in + c, h] = conv_w[h, c, k].
    wc = jnp.transpose(conv_w, (2, 1, 0)).reshape(WIN, HIDDEN_DIM).astype(jnp.float32)
    # Block-banded fused weight covering all L_OUT shifted windows in one matmul.
    wc_big = jnp.zeros((FLAT_IN, FUSED_N), jnp.float32)
    for l in range(L_OUT):
        wc_big = wc_big.at[l * INPUT_DIM:l * INPUT_DIM + WIN,
                           l * HIDDEN_DIM:(l + 1) * HIDDEN_DIM].set(wc)
    wc_big = wc_big.astype(jnp.bfloat16)

    bc = conv_b.reshape(1, HIDDEN_DIM).astype(jnp.float32)
    wf = jnp.transpose(fc_w, (1, 0)).astype(jnp.bfloat16)      # (H, O)
    bf = fc_b.reshape(1, OUTPUT_DIM).astype(jnp.float32)
    return wc_big, bc, wf, bf


def cnn_forward_batched(x, params, *, block_b=None):
    """x: (B, HISTORY_WINDOW, INPUT_DIM) float  ->  (B, OUTPUT_DIM) f32.

    x is consumed in bf16 (the kernel always computed in bf16); feeding bf16
    directly from the producer halves the dominant HBM read, otherwise the cast
    below is applied once here.
    """
    wc, bc, wf, bf = params
    b = x.shape[0]

    # Flatten each sample (free contiguous reshape) and cast to bf16.
    x2 = x.reshape(b, FLAT_IN).astype(jnp.bfloat16)

    if block_b is None:
        block_b = _choose_block_b(b)
    block_b = _round_up(max(block_b, 16), 16)      # bf16 sublane-pair alignment
    padded_b = _round_up(b, block_b)
    if padded_b != b:
        x2 = jnp.pad(x2, ((0, padded_b - b), (0, 0)))
    grid = (padded_b // block_b,)

    const = lambda i: (0, 0)   # weights: same block every step -> loaded once, stay in VMEM
    out = pl.pallas_call(
        cnn_forward_kernel,
        out_shape=jax.ShapeDtypeStruct((padded_b, OUTPUT_DIM), jnp.float32),
        grid=grid,
        in_specs=[
            pl.BlockSpec((block_b, FLAT_IN), lambda i: (i, 0)),   # x: tiled over batch
            pl.BlockSpec((FLAT_IN, FUSED_N), const),              # fused conv weight
            pl.BlockSpec((1, HIDDEN_DIM), const),                 # conv bias
            pl.BlockSpec((HIDDEN_DIM, OUTPUT_DIM), const),        # fc weight
            pl.BlockSpec((1, OUTPUT_DIM), const),                 # fc bias
        ],
        out_specs=pl.BlockSpec((block_b, OUTPUT_DIM), lambda i: (i, 0)),
        compiler_params=pltpu.CompilerParams(
            dimension_semantics=("parallel",),   # shard batch blocks across v7x's 2 TCs
        ),
    )(x2, wc, bc, wf, bf)

    return out if padded_b == b else out[:b]


def cnn_forward(x, params):
    """Single-sample forward matching the PyTorch module: (L, C_in) -> (1, O)."""
    return cnn_forward_batched(x[None], params, block_b=16)


def cnn_forward_ref_single(x, conv_w, conv_b, fc_w, fc_b):
    """Pure-JAX f32 reference matching the PyTorch forward semantics exactly."""
    # windows[l, c, k] = x[l + k, c]
    windows = jnp.stack([x[l:l + KERNEL, :].T for l in range(L_OUT)], axis=0)
    y = jnp.einsum("lck,hck->lh", windows, conv_w) + conv_b[None, :]   # (L_OUT, H)
    y = jnp.maximum(y, 0.0)
    pooled = jnp.max(y, axis=0, keepdims=True)                         # (1, H)
    return pooled @ fc_w.T + fc_b[None, :]                             # (1, O)


if __name__ == "__main__":
    key = jax.random.PRNGKey(0)
    kx, kx2, kcw, kcb, kfw, kfb = jax.random.split(key, 6)

    conv_w = 0.1 * jax.random.normal(kcw, (HIDDEN_DIM, INPUT_DIM, KERNEL), jnp.float32)
    conv_b = 0.1 * jax.random.normal(kcb, (HIDDEN_DIM,), jnp.float32)
    fc_w = 0.1 * jax.random.normal(kfw, (OUTPUT_DIM, HIDDEN_DIM), jnp.float32)
    fc_b = 0.1 * jax.random.normal(kfb, (OUTPUT_DIM,), jnp.float32)

    # One-time parameter layout / dtype preparation (hoisted out of the hot path).
    params = prepare_params(conv_w, conv_b, fc_w, fc_b)
    ref_single = lambda xi: cnn_forward_ref_single(xi, conv_w, conv_b, fc_w, fc_b)[0]
    fwd = jax.jit(functools.partial(cnn_forward_batched, params=params))

    # Small batch (exercises batch padding within a single block).
    BATCH = 2
    x = jax.random.normal(kx, (BATCH, HISTORY_WINDOW, INPUT_DIM), jnp.float32)
    out = jax.block_until_ready(fwd(x))
    assert out.shape == (BATCH, OUTPUT_DIM)
    ref = jax.vmap(ref_single)(x)
    # bf16 matmuls (f32 accumulation) vs f32 reference -> loose-ish tolerance.
    assert jnp.allclose(out, ref, atol=5e-2, rtol=5e-2), float(jnp.max(jnp.abs(out - ref)))

    # Larger batch: exercises the multi-block 'parallel' grid path (>=2 blocks).
    BATCH2 = 1024
    xb = jax.random.normal(kx2, (BATCH2, HISTORY_WINDOW, INPUT_DIM), jnp.float32)
    out2 = jax.block_until_ready(fwd(xb))
    ref2 = jax.vmap(ref_single)(xb)
    assert out2.shape == (BATCH2, OUTPUT_DIM)
    assert jnp.allclose(out2, ref2, atol=5e-2, rtol=5e-2), float(jnp.max(jnp.abs(out2 - ref2)))

    # Single-sample path, matching the module's (L, C_in) -> (1, O) forward.
    out1 = jax.block_until_ready(cnn_forward(x[0], params))
    assert out1.shape == (1, OUTPUT_DIM)
    assert jnp.allclose(out1, ref[0:1], atol=5e-2, rtol=5e-2)

    print("KERNEL_OK")
</pallas_src>

<mosaic_0001>
module attributes {stable_mosaic.version = 11 : i64} {
  func.func @cnn_forward_kernel(%arg0: i32, %arg1: memref<256x32xbf16, #tpu.memory_space<vmem>>, %arg2: memref<32x224xbf16, #tpu.memory_space<vmem>>, %arg3: memref<1x32xf32, #tpu.memory_space<vmem>>, %arg4: memref<32x8xbf16, #tpu.memory_space<vmem>>, %arg5: memref<1x8xf32, #tpu.memory_space<vmem>>, %arg6: memref<256x8xf32, #tpu.memory_space<vmem>>) attributes {dimension_semantics = [#tpu.dimension_semantics<parallel>], iteration_bounds = array<i64: 1>, scalar_prefetch = 0 : i64, scratch_operands = 0 : i64, tpu.core_type = #tpu.core_type<tc>, window_params = [{transform_indices = @transform_0, window_bounds = array<i64: 256, 32>}, {pipeline_mode = #tpu.pipeline_mode<synchronous>, transform_indices = @transform_1, window_bounds = array<i64: 32, 224>}, {pipeline_mode = #tpu.pipeline_mode<synchronous>, transform_indices = @transform_2, window_bounds = array<i64: 1, 32>}, {pipeline_mode = #tpu.pipeline_mode<synchronous>, transform_indices = @transform_3, window_bounds = array<i64: 32, 8>}, {pipeline_mode = #tpu.pipeline_mode<synchronous>, transform_indices = @transform_4, window_bounds = array<i64: 1, 8>}, {transform_indices = @transform_5, window_bounds = array<i64: 256, 8>}]} {
    %c0 = arith.constant 0 : index
    %c0_0 = arith.constant 0 : index
    %0 = vector.load %arg1[%c0, %c0_0] : memref<256x32xbf16, #tpu.memory_space<vmem>>, vector<256x32xbf16>
    %c0_1 = arith.constant 0 : index
    %c0_2 = arith.constant 0 : index
    %1 = vector.load %arg2[%c0_1, %c0_2] : memref<32x224xbf16, #tpu.memory_space<vmem>>, vector<32x224xbf16>
    %cst = arith.constant dense<0.000000e+00> : vector<256x224xf32>
    %2 = tpu.matmul %0, %1, %cst {dimension_numbers = #tpu.dot_dimension_numbers<[1], [0], [0], [1], [0, 0, 1, 1], [], []>} : vector<256x32xbf16>, vector<32x224xbf16>, vector<256x224xf32> -> vector<256x224xf32>
    %3 = vector.extract_strided_slice %2 {offsets = [0, 0], sizes = [256, 32], strides = [1, 1]} : vector<256x224xf32> to vector<256x32xf32>
    %4 = vector.extract_strided_slice %2 {offsets = [0, 32], sizes = [256, 32], strides = [1, 1]} : vector<256x224xf32> to vector<256x32xf32>
    %5 = vector.extract_strided_slice %2 {offsets = [0, 64], sizes = [256, 32], strides = [1, 1]} : vector<256x224xf32> to vector<256x32xf32>
    %6 = vector.extract_strided_slice %2 {offsets = [0, 96], sizes = [256, 32], strides = [1, 1]} : vector<256x224xf32> to vector<256x32xf32>
    %7 = vector.extract_strided_slice %2 {offsets = [0, 128], sizes = [256, 32], strides = [1, 1]} : vector<256x224xf32> to vector<256x32xf32>
    %8 = vector.extract_strided_slice %2 {offsets = [0, 160], sizes = [256, 32], strides = [1, 1]} : vector<256x224xf32> to vector<256x32xf32>
    %9 = vector.extract_strided_slice %2 {offsets = [0, 192], sizes = [256, 32], strides = [1, 1]} : vector<256x224xf32> to vector<256x32xf32>
    %10 = arith.maximumf %3, %4 : vector<256x32xf32>
    %11 = arith.maximumf %5, %6 : vector<256x32xf32>
    %12 = arith.maximumf %7, %8 : vector<256x32xf32>
    %13 = arith.maximumf %10, %11 : vector<256x32xf32>
    %14 = arith.maximumf %12, %9 : vector<256x32xf32>
    %15 = arith.maximumf %13, %14 : vector<256x32xf32>
    %c0_3 = arith.constant 0 : index
    %c0_4 = arith.constant 0 : index
    %16 = vector.load %arg3[%c0_3, %c0_4] : memref<1x32xf32, #tpu.memory_space<vmem>>, vector<1x32xf32>
    %17 = vector.broadcast %16 : vector<1x32xf32> to vector<256x32xf32>
    %18 = arith.addf %15, %17 : vector<256x32xf32>
    %cst_5 = arith.constant 0.000000e+00 : f32
    %19 = vector.broadcast %cst_5 : f32 to vector<256x32xf32>
    %20 = arith.maximumf %18, %19 : vector<256x32xf32>
    %21 = arith.truncf %20 : vector<256x32xf32> to vector<256x32xbf16>
    %c0_6 = arith.constant 0 : index
    %c0_7 = arith.constant 0 : index
    %22 = vector.load %arg4[%c0_6, %c0_7] : memref<32x8xbf16, #tpu.memory_space<vmem>>, vector<32x8xbf16>
    %cst_8 = arith.constant dense<0.000000e+00> : vector<256x8xf32>
    %23 = tpu.matmul %21, %22, %cst_8 {dimension_numbers = #tpu.dot_dimension_numbers<[1], [0], [0], [1], [0, 0, 1, 1], [], []>} : vector<256x32xbf16>, vector<32x8xbf16>, vector<256x8xf32> -> vector<256x8xf32>
    %c0_9 = arith.constant 0 : index
    %c0_10 = arith.constant 0 : index
    %24 = vector.load %arg5[%c0_9, %c0_10] : memref<1x8xf32, #tpu.memory_space<vmem>>, vector<1x8xf32>
    %25 = vector.broadcast %24 : vector<1x8xf32> to vector<256x8xf32>
    %26 = arith.addf %23, %25 : vector<256x8xf32>
    %c0_11 = arith.constant 0 : index
    %c0_12 = arith.constant 0 : index
    %27 = vector.load %arg6[%c0_11, %c0_12] : memref<256x8xf32, #tpu.memory_space<vmem>>, vector<256x8xf32>
    tpu.vector_store %arg6[%c0_11, %c0_12], %26 {strides = array<i32>} : memref<256x8xf32, #tpu.memory_space<vmem>>, vector<256x8xf32>,
    return
  }
  func.func @transform_0(%arg0: i32) -> (i32, i32) {
    %c0_i32 = arith.constant 0 : i32
    %c0_i32_0 = arith.constant 0 : i32
    return %arg0, %c0_i32 : i32, i32
  }
  func.func @transform_1(%arg0: i32) -> (i32, i32) {
    %c0_i32 = arith.constant 0 : i32
    %c0_i32_0 = arith.constant 0 : i32
    %c0_i32_1 = arith.constant 0 : i32
    return %c0_i32, %c0_i32_0 : i32, i32
  }
  func.func @transform_2(%arg0: i32) -> (i32, i32) {
    %c0_i32 = arith.constant 0 : i32
    %c0_i32_0 = arith.constant 0 : i32
    %c0_i32_1 = arith.constant 0 : i32
    return %c0_i32, %c0_i32_0 : i32, i32
  }
  func.func @transform_3(%arg0: i32) -> (i32, i32) {
    %c0_i32 = arith.constant 0 : i32
    %c0_i32_0 = arith.constant 0 : i32
    %c0_i32_1 = arith.constant 0 : i32
    return %c0_i32, %c0_i32_0 : i32, i32
  }
  func.func @transform_4(%arg0: i32) -> (i32, i32) {
    %c0_i32 = arith.constant 0 : i32
    %c0_i32_0 = arith.constant 0 : i32
    %c0_i32_1 = arith.constant 0 : i32
    return %c0_i32, %c0_i32_0 : i32, i32
  }
  func.func @transform_5(%arg0: i32) -> (i32, i32) {
    %c0_i32 = arith.constant 0 : i32
    %c0_i32_0 = arith.constant 0 : i32
    return %arg0, %c0_i32 : i32, i32
  }
}

</mosaic_0001>

<llo_original>
// kernel: cnn_forward_batched.1
$region0: #{cnn_forward_batched.1}
  #allocation0 [shape = 'u32[]', space=smem, size = 0x4, offset = 0x4, fixed_abs, tag = 'smem constant byte address 0x4 - core index']
  #allocation1 [shape = 'u32[144,128]{1,0:T(1,128)}', space=vmem, size = 0x12000, scoped, tag = 'internal scratch']
  %s0 = inlined_call_operand.vmem [shape: bf16[256,32], index: 0, kind: input, shape index: {}]
  %s1 = inlined_call_operand.vmem [shape: bf16[32,224], index: 1, kind: input, shape index: {}]
  %s2 = inlined_call_operand.vmem [shape: f32[1,32], index: 2, kind: input, shape index: {}]
  %s3 = inlined_call_operand.vmem [shape: bf16[32,8], index: 3, kind: input, shape index: {}]
  %s4 = inlined_call_operand.vmem [shape: f32[1,8], index: 4, kind: input, shape index: {}]
  %s5 = inlined_call_operand.vmem [shape: f32[256,8], index: 5, kind: output, shape index: {}]
  %s6 = sld [smem:[#allocation0]]
  $region30: #{cnn_forward_batched.1} parent=0
    _
  %s8 = ssub.s32 1, %s6
  %s9 = scalar_select 0, %s8, %s6
  // Predicated region
  $region2: #{cnn_forward_batched.1} parent=0 // pred_check
    _
  $region3: #{cnn_forward_batched.1} parent=0 // pred_check_branch
    %11 = sbr.rel (0) target = $region5
  $region4: #{cnn_forward_batched.1} parent=0 // pred_region
    _
  $region5: #{cnn_forward_batched.1} parent=0 // pred_fallthru
    _
  // Predicated region
  $region6: #{cnn_forward_batched.1} parent=0 // pred_check
    _
  $region7: #{cnn_forward_batched.1} parent=0 // pred_check_branch
    %13 = sbr.rel (0) target = $region9
  $region8: #{cnn_forward_batched.1} parent=0 // pred_region
    _
  $region9: #{cnn_forward_batched.1} parent=0 // pred_fallthru
    _
  // Predicated region
  $region10: #{cnn_forward_batched.1} parent=0 // pred_check
    _
  $region11: #{cnn_forward_batched.1} parent=0 // pred_check_branch
    %15 = sbr.rel (0) target = $region13
  $region12: #{cnn_forward_batched.1} parent=0 // pred_region
    _
  $region13: #{cnn_forward_batched.1} parent=0 // pred_fallthru
    _
  // Predicated region
  $region14: #{cnn_forward_batched.1} parent=0 // pred_check
    _
  $region15: #{cnn_forward_batched.1} parent=0 // pred_check_branch
    %17 = sbr.rel (0) target = $region17
  $region16: #{cnn_forward_batched.1} parent=0 // pred_region
    _
  $region17: #{cnn_forward_batched.1} parent=0 // pred_fallthru
    _
  // Predicated region
  $region18: #{cnn_forward_batched.1} parent=0 // pred_check
    _
  $region19: #{cnn_forward_batched.1} parent=0 // pred_check_branch
    %19 = sbr.rel (0) target = $region21
  $region20: #{cnn_forward_batched.1} parent=0 // pred_region
    _
  $region21: #{cnn_forward_batched.1} parent=0 // pred_fallthru
    _
  %v21 = vld [vmem:[%s0] sm:$0xf]
  %v22 = vld [vmem:[%s0 + $0x4] sm:$0xf]
  %v23 = vld [vmem:[%s0 + $0x8] sm:$0xf]
  %v24 = vld [vmem:[%s0 + $0xc] sm:$0xf]
  %v25 = vld [vmem:[%s0 + $0x10] sm:$0xf]
  %v26 = vld [vmem:[%s0 + $0x14] sm:$0xf]
  %v27 = vld [vmem:[%s0 + $0x18] sm:$0xf]
  %v28 = vld [vmem:[%s0 + $0x1c] sm:$0xf]
  %v29 = vld [vmem:[%s0 + $0x20] sm:$0xf]
  %v30 = vld [vmem:[%s0 + $0x24] sm:$0xf]
  %v31 = vld [vmem:[%s0 + $0x28] sm:$0xf]
  %v32 = vld [vmem:[%s0 + $0x2c] sm:$0xf]
  %v33 = vld [vmem:[%s0 + $0x30] sm:$0xf]
  %v34 = vld [vmem:[%s0 + $0x34] sm:$0xf]
  %v35 = vld [vmem:[%s0 + $0x38] sm:$0xf]
  %v36 = vld [vmem:[%s0 + $0x3c] sm:$0xf]
  %v37 = vld [vmem:[%s0 + $0x40] sm:$0xf]
  %v38 = vld [vmem:[%s0 + $0x44] sm:$0xf]
  %v39 = vld [vmem:[%s0 + $0x48] sm:$0xf]
  %v40 = vld [vmem:[%s0 + $0x4c] sm:$0xf]
  %v41 = vld [vmem:[%s0 + $0x50] sm:$0xf]
  %v42 = vld [vmem:[%s0 + $0x54] sm:$0xf]
  %v43 = vld [vmem:[%s0 + $0x58] sm:$0xf]
  %v44 = vld [vmem:[%s0 + $0x5c] sm:$0xf]
  %v45 = vld [vmem:[%s0 + $0x60] sm:$0xf]
  %v46 = vld [vmem:[%s0 + $0x64] sm:$0xf]
  %v47 = vld [vmem:[%s0 + $0x68] sm:$0xf]
  %v48 = vld [vmem:[%s0 + $0x6c] sm:$0xf]
  %v49 = vld [vmem:[%s0 + $0x70] sm:$0xf]
  %v50 = vld [vmem:[%s0 + $0x74] sm:$0xf]
  %v51 = vld [vmem:[%s0 + $0x78] sm:$0xf]
  %v52 = vld [vmem:[%s0 + $0x7c] sm:$0xf]
  %v53 = vld [vmem:[%s1] sm:$0xff]
  %v54 = vld [vmem:[%s1 + $0x8] sm:$0xff]
  %v55 = vld [vmem:[%s1 + $0x10] sm:$0xff]
  %v56 = vld [vmem:[%s1 + $0x18] sm:$0xff]
  %v89 = vunpack.c.l.b16 %v21
  %v90 = vunpack.c.l.b16 %v22
  %v91 = vunpack.c.l.b16 %v23
  %v92 = vunpack.c.l.b16 %v24
  %v93 = vunpack.c.l.b16 %v25
  %v94 = vunpack.c.l.b16 %v26
  %v95 = vunpack.c.l.b16 %v27
  %v96 = vunpack.c.l.b16 %v28
  %v97 = vunpack.c.l.b16 %v29
  %v98 = vunpack.c.l.b16 %v30
  %v99 = vunpack.c.l.b16 %v31
  %v100 = vunpack.c.l.b16 %v32
  %v101 = vunpack.c.l.b16 %v33
  %v102 = vunpack.c.l.b16 %v34
  %v103 = vunpack.c.l.b16 %v35
  %v104 = vunpack.c.l.b16 %v36
  %v105 = vunpack.c.l.b16 %v37
  %v106 = vunpack.c.l.b16 %v38
  %v107 = vunpack.c.l.b16 %v39
  %v108 = vunpack.c.l.b16 %v40
  %v109 = vunpack.c.l.b16 %v41
  %v110 = vunpack.c.l.b16 %v42
  %v111 = vunpack.c.l.b16 %v43
  %v112 = vunpack.c.l.b16 %v44
  %v113 = vunpack.c.l.b16 %v45
  %v114 = vunpack.c.l.b16 %v46
  %v115 = vunpack.c.l.b16 %v47
  %v116 = vunpack.c.l.b16 %v48
  %v117 = vunpack.c.l.b16 %v49
  %v118 = vunpack.c.l.b16 %v50
  %v119 = vunpack.c.l.b16 %v51
  %v120 = vunpack.c.l.b16 %v52
  %v121 = vpack.c.b16 %v90, %v89
  %v122 = vpack.c.b16 %v92, %v91
  %v123 = vpack.c.b16 %v94, %v93
  %v124 = vpack.c.b16 %v96, %v95
  %v125 = vpack.c.b16 %v98, %v97
  %v126 = vpack.c.b16 %v100, %v99
  %v127 = vpack.c.b16 %v102, %v101
  %v128 = vpack.c.b16 %v104, %v103
  %v129 = vpack.c.b16 %v106, %v105
  %v130 = vpack.c.b16 %v108, %v107
  %v131 = vpack.c.b16 %v110, %v109
  %v132 = vpack.c.b16 %v112, %v111
  %v133 = vpack.c.b16 %v114, %v113
  %v134 = vpack.c.b16 %v116, %v115
  %v135 = vpack.c.b16 %v118, %v117
  %v136 = vpack.c.b16 %v120, %v119
  %v141 = vunpack.c.l.b16 %v53
  %v142 = vunpack.c.h.b16 %v53
  %v143 = vunpack.c.l.b16 %v54
  %v144 = vunpack.c.h.b16 %v54
  %v145 = vunpack.c.l.b16 %v55
  %v146 = vunpack.c.h.b16 %v55
  %v147 = vunpack.c.l.b16 %v56
  %v148 = vunpack.c.h.b16 %v56
  %v149 = vpack.c.b16 %v143, %v141
  %v150 = vpack.c.b16 %v144, %v142
  %v151 = vpack.c.b16 %v147, %v145
  %v152 = vpack.c.b16 %v148, %v146
  %vm157 = vcmask 261120
  %v159 = vsel %vm157, %v121, 0
  %v162 = vsel %vm157, %v122, 0
  %v165 = vsel %vm157, %v123, 0
  %v168 = vsel %vm157, %v124, 0
  %v171 = vsel %vm157, %v125, 0
  %v174 = vsel %vm157, %v126, 0
  %v177 = vsel %vm157, %v127, 0
  %v180 = vsel %vm157, %v128, 0
  %v183 = vsel %vm157, %v129, 0
  %v186 = vsel %vm157, %v130, 0
  %v189 = vsel %vm157, %v131, 0
  %v192 = vsel %vm157, %v132, 0
  %v195 = vsel %vm157, %v133, 0
  %v198 = vsel %vm157, %v134, 0
  %v201 = vsel %vm157, %v135, 0
  %v204 = vsel %vm157, %v136, 0
  %206 = vmatprep.subr.bf16.mxu0 %v150
  %207 = vmatpush1.bf16.msra.mxu0 %v149
  %208 = vmatprep.subr.bf16.mxu0 %v152
  %209 = vmatpush1.bf16.msra.mxu0 %v151
  %210 = vmatprep.subr.bf16.mxu0 0
  %211 = vmatpush1.bf16.msra.mxu0 0
  %212 = vmatprep.subr.bf16.mxu0 0
  %213 = vmatpush1.bf16.msra.mxu0 0
  %214 = vmatprep.subr.bf16.mxu0 0
  %215 = vmatpush1.bf16.msra.mxu0 0
  %216 = vmatprep.subr.bf16.mxu0 0
  %217 = vmatpush1.bf16.msra.mxu0 0
  %218 = vmatprep.subr.bf16.mxu0 0
  %219 = vmatpush1.bf16.msra.mxu0 0
  %220 = vmatprep.subr.bf16.mxu0 0
  %221 = vmatpush1.bf16.msra.mxu0 0
  %222 = vmatprep.subr.bf16.mxu0 0
  %223 = vmatpush1.bf16.msra.mxu0 0
  %224 = vmatprep.subr.bf16.mxu0 0
  %225 = vmatpush1.bf16.msra.mxu0 0
  %226 = vmatprep.subr.bf16.mxu0 0
  %227 = vmatpush1.bf16.msra.mxu0 0
  %228 = vmatprep.subr.bf16.mxu0 0
  %229 = vmatpush1.bf16.msra.mxu0 0
  %230 = vmatprep.subr.bf16.mxu0 0
  %231 = vmatpush1.bf16.msra.mxu0 0
  %232 = vmatprep.subr.bf16.mxu0 0
  %233 = vmatpush1.bf16.msra.mxu0 0
  %234 = vmatprep.subr.bf16.mxu0 0
  %235 = vmatpush1.bf16.msra.mxu0 0
  %236 = vmatprep.subr.bf16.mxu0 0
  %237 = vmatpush1.bf16.msra.mxu0 0
  %238 = vmatprep.mubr.bf16.mxu0 0
  %239 = vmatmul.mubr.bf16.gmra.mrb[0].mxu0 %v159
  %v240 = vpop.f32.mrb[0].mxu0
  %v241 = vadd.f32 0.0, %v240
  %v242 = vpop.f32.mrb[0].mxu0
  %v243 = vadd.f32 0.0, %v242
  %v244 = vpop.f32.mrb[0].mxu0
  %v245 = vadd.f32 0.0, %v244
  %v246 = vpop.f32.mrb[0].mxu0
  %v247 = vadd.f32 0.0, %v246
  %248 = vmatprep.mubr.bf16.mxu0 0
  %249 = vmatmul.mubr.bf16.gmra.mrb[0].mxu0 %v162
  %v250 = vpop.f32.mrb[0].mxu0
  %v251 = vadd.f32 0.0, %v250
  %v252 = vpop.f32.mrb[0].mxu0
  %v253 = vadd.f32 0.0, %v252
  %v254 = vpop.f32.mrb[0].mxu0
  %v255 = vadd.f32 0.0, %v254
  %v256 = vpop.f32.mrb[0].mxu0
  %v257 = vadd.f32 0.0, %v256
  %258 = vmatprep.mubr.bf16.mxu0 0
  %259 = vmatmul.mubr.bf16.gmra.mrb[0].mxu0 %v165
  %v260 = vpop.f32.mrb[0].mxu0
  %v261 = vadd.f32 0.0, %v260
  %v262 = vpop.f32.mrb[0].mxu0
  %v263 = vadd.f32 0.0, %v262
  %v264 = vpop.f32.mrb[0].mxu0
  %v265 = vadd.f32 0.0, %v264
  %v266 = vpop.f32.mrb[0].mxu0
  %v267 = vadd.f32 0.0, %v266
  %268 = vmatprep.mubr.bf16.mxu0 0
  %269 = vmatmul.mubr.bf16.gmra.mrb[0].mxu0 %v168
  %v270 = vpop.f32.mrb[0].mxu0
  %v271 = vadd.f32 0.0, %v270
  %v272 = vpop.f32.mrb[0].mxu0
  %v273 = vadd.f32 0.0, %v272
  %v274 = vpop.f32.mrb[0].mxu0
  %v275 = vadd.f32 0.0, %v274
  %v276 = vpop.f32.mrb[0].mxu0
  %v277 = vadd.f32 0.0, %v276
  %278 = vmatprep.mubr.bf16.mxu0 0
  %279 = vmatmul.mubr.bf16.gmra.mrb[0].mxu0 %v171
  %v280 = vpop.f32.mrb[0].mxu0
  %v281 = vadd.f32 0.0, %v280
  %v282 = vpop.f32.mrb[0].mxu0
  %v283 = vadd.f32 0.0, %v282
  %v284 = vpop.f32.mrb[0].mxu0
  %v285 = vadd.f32 0.0, %v284
  %v286 = vpop.f32.mrb[0].mxu0
  %v287 = vadd.f32 0.0, %v286
  %288 = vmatprep.mubr.bf16.mxu0 0
  %289 = vmatmul.mubr.bf16.gmra.mrb[0].mxu0 %v174
  %v290 = vpop.f32.mrb[0].mxu0
  %v291 = vadd.f32 0.0, %v290
  %v292 = vpop.f32.mrb[0].mxu0
  %v293 = vadd.f32 0.0, %v292
  %v294 = vpop.f32.mrb[0].mxu0
  %v295 = vadd.f32 0.0, %v294
  %v296 = vpop.f32.mrb[0].mxu0
  %v297 = vadd.f32 0.0, %v296
  %298 = vmatprep.mubr.bf16.mxu0 0
  %299 = vmatmul.mubr.bf16.gmra.mrb[0].mxu0 %v177
  %v300 = vpop.f32.mrb[0].mxu0
  %v301 = vadd.f32 0.0, %v300
  %v302 = vpop.f32.mrb[0].mxu0
  %v303 = vadd.f32 0.0, %v302
  %v304 = vpop.f32.mrb[0].mxu0
  %v305 = vadd.f32 0.0, %v304
  %v306 = vpop.f32.mrb[0].mxu0
  %v307 = vadd.f32 0.0, %v306
  %308 = vmatprep.mubr.bf16.mxu0 0
  %309 = vmatmul.mubr.bf16.gmra.mrb[0].mxu0 %v180
  %v310 = vpop.f32.mrb[0].mxu0
  %v311 = vadd.f32 0.0, %v310
  %v312 = vpop.f32.mrb[0].mxu0
  %v313 = vadd.f32 0.0, %v312
  %v314 = vpop.f32.mrb[0].mxu0
  %v315 = vadd.f32 0.0, %v314
  %v316 = vpop.f32.mrb[0].mxu0
  %v317 = vadd.f32 0.0, %v316
  %318 = vmatprep.mubr.bf16.mxu0 0
  %319 = vmatmul.mubr.bf16.gmra.mrb[0].mxu0 %v183
  %v320 = vpop.f32.mrb[0].mxu0
  %v321 = vadd.f32 0.0, %v320
  %v322 = vpop.f32.mrb[0].mxu0
  %v323 = vadd.f32 0.0, %v322
  %v324 = vpop.f32.mrb[0].mxu0
  %v325 = vadd.f32 0.0, %v324
  %v326 = vpop.f32.mrb[0].mxu0
  %v327 = vadd.f32 0.0, %v326
  %328 = vmatprep.mubr.bf16.mxu0 0
  %329 = vmatmul.mubr.bf16.gmra.mrb[0].mxu0 %v186
  %v330 = vpop.f32.mrb[0].mxu0
  %v331 = vadd.f32 0.0, %v330
  %v332 = vpop.f32.mrb[0].mxu0
  %v333 = vadd.f32 0.0, %v332
  %v334 = vpop.f32.mrb[0].mxu0
  %v335 = vadd.f32 0.0, %v334
  %v336 = vpop.f32.mrb[0].mxu0
  %v337 = vadd.f32 0.0, %v336
  %338 = vmatprep.mubr.bf16.mxu0 0
  %339 = vmatmul.mubr.bf16.gmra.mrb[0].mxu0 %v189
  %v340 = vpop.f32.mrb[0].mxu0
  %v341 = vadd.f32 0.0, %v340
  %v342 = vpop.f32.mrb[0].mxu0
  %v343 = vadd.f32 0.0, %v342
  %v344 = vpop.f32.mrb[0].mxu0
  %v345 = vadd.f32 0.0, %v344
  %v346 = vpop.f32.mrb[0].mxu0
  %v347 = vadd.f32 0.0, %v346
  %348 = vmatprep.mubr.bf16.mxu0 0
  %349 = vmatmul.mubr.bf16.gmra.mrb[0].mxu0 %v192
  %v350 = vpop.f32.mrb[0].mxu0
  %v351 = vadd.f32 0.0, %v350
  %v352 = vpop.f32.mrb[0].mxu0
  %v353 = vadd.f32 0.0, %v352
  %v354 = vpop.f32.mrb[0].mxu0
  %v355 = vadd.f32 0.0, %v354
  %v356 = vpop.f32.mrb[0].mxu0
  %v357 = vadd.f32 0.0, %v356
  %358 = vmatprep.mubr.bf16.mxu0 0
  %359 = vmatmul.mubr.bf16.gmra.mrb[0].mxu0 %v195
  %v360 = vpop.f32.mrb[0].mxu0
  %v361 = vadd.f32 0.0, %v360
  %v362 = vpop.f32.mrb[0].mxu0
  %v363 = vadd.f32 0.0, %v362
  %v364 = vpop.f32.mrb[0].mxu0
  %v365 = vadd.f32 0.0, %v364
  %v366 = vpop.f32.mrb[0].mxu0
  %v367 = vadd.f32 0.0, %v366
  %368 = vmatprep.mubr.bf16.mxu0 0
  %369 = vmatmul.mubr.bf16.gmra.mrb[0].mxu0 %v198
  %v370 = vpop.f32.mrb[0].mxu0
  %v371 = vadd.f32 0.0, %v370
  %v372 = vpop.f32.mrb[0].mxu0
  %v373 = vadd.f32 0.0, %v372
  %v374 = vpop.f32.mrb[0].mxu0
  %v375 = vadd.f32 0.0, %v374
  %v376 = vpop.f32.mrb[0].mxu0
  %v377 = vadd.f32 0.0, %v376
  %378 = vmatprep.mubr.bf16.mxu0 0
  %379 = vmatmul.mubr.bf16.gmra.mrb[0].mxu0 %v201
  %v380 = vpop.f32.mrb[0].mxu0
  %v381 = vadd.f32 0.0, %v380
  %v382 = vpop.f32.mrb[0].mxu0
  %v383 = vadd.f32 0.0, %v382
  %v384 = vpop.f32.mrb[0].mxu0
  %v385 = vadd.f32 0.0, %v384
  %v386 = vpop.f32.mrb[0].mxu0
  %v387 = vadd.f32 0.0, %v386
  %388 = vmatprep.mubr.bf16.mxu0 0
  %389 = vmatmul.mubr.bf16.gmra.mrb[0].mxu0 %v204
  %v390 = vpop.f32.mrb[0].mxu0
  %v391 = vadd.f32 0.0, %v390
  %v392 = vpop.f32.mrb[0].mxu0
  %v393 = vadd.f32 0.0, %v392
  %v394 = vpop.f32.mrb[0].mxu0
  %v395 = vadd.f32 0.0, %v394
  %v396 = vpop.f32.mrb[0].mxu0
  %v397 = vadd.f32 0.0, %v396
  %398 = vdwg.mxu0
  %431 = vrot.lane.b32.xlu0 %v241, 96
  %v432 = vpop.permute.xlu0 %431
  %433 = vrot.lane.b32.xlu0 %v245, 96
  %v434 = vpop.permute.xlu0 %433
  %435 = vrot.lane.b32.xlu0 %v251, 96
  %v436 = vpop.permute.xlu0 %435
  %437 = vrot.lane.b32.xlu0 %v255, 96
  %v438 = vpop.permute.xlu0 %437
  %439 = vrot.lane.b32.xlu0 %v261, 96
  %v440 = vpop.permute.xlu0 %439
  %441 = vrot.lane.b32.xlu0 %v265, 96
  %v442 = vpop.permute.xlu0 %441
  %443 = vrot.lane.b32.xlu0 %v271, 96
  %v444 = vpop.permute.xlu0 %443
  %445 = vrot.lane.b32.xlu0 %v275, 96
  %v446 = vpop.permute.xlu0 %445
  %447 = vrot.lane.b32.xlu0 %v281, 96
  %v448 = vpop.permute.xlu0 %447
  %449 = vrot.lane.b32.xlu0 %v285, 96
  %v450 = vpop.permute.xlu0 %449
  %451 = vrot.lane.b32.xlu0 %v291, 96
  %v452 = vpop.permute.xlu0 %451
  %453 = vrot.lane.b32.xlu0 %v295, 96
  %v454 = vpop.permute.xlu0 %453
  %455 = vrot.lane.b32.xlu0 %v301, 96
  %v456 = vpop.permute.xlu0 %455
  %457 = vrot.lane.b32.xlu0 %v305, 96
  %v458 = vpop.permute.xlu0 %457
  %459 = vrot.lane.b32.xlu0 %v311, 96
  %v460 = vpop.permute.xlu0 %459
  %461 = vrot.lane.b32.xlu0 %v315, 96
  %v462 = vpop.permute.xlu0 %461
  %463 = vrot.lane.b32.xlu0 %v321, 96
  %v464 = vpop.permute.xlu0 %463
  %465 = vrot.lane.b32.xlu0 %v325, 96
  %v466 = vpop.permute.xlu0 %465
  %467 = vrot.lane.b32.xlu0 %v331, 96
  %v468 = vpop.permute.xlu0 %467
  %469 = vrot.lane.b32.xlu0 %v335, 96
  %v470 = vpop.permute.xlu0 %469
  %471 = vrot.lane.b32.xlu0 %v341, 96
  %v472 = vpop.permute.xlu0 %471
  %473 = vrot.lane.b32.xlu0 %v345, 96
  %v474 = vpop.permute.xlu0 %473
  %475 = vrot.lane.b32.xlu0 %v351, 96
  %v476 = vpop.permute.xlu0 %475
  %477 = vrot.lane.b32.xlu0 %v355, 96
  %v478 = vpop.permute.xlu0 %477
  %479 = vrot.lane.b32.xlu0 %v361, 96
  %v480 = vpop.permute.xlu0 %479
  %481 = vrot.lane.b32.xlu0 %v365, 96
  %v482 = vpop.permute.xlu0 %481
  %483 = vrot.lane.b32.xlu0 %v371, 96
  %v484 = vpop.permute.xlu0 %483
  %485 = vrot.lane.b32.xlu0 %v375, 96
  %v486 = vpop.permute.xlu0 %485
  %487 = vrot.lane.b32.xlu0 %v381, 96
  %v488 = vpop.permute.xlu0 %487
  %489 = vrot.lane.b32.xlu0 %v385, 96
  %v490 = vpop.permute.xlu0 %489
  %491 = vrot.lane.b32.xlu0 %v391, 96
  %v492 = vpop.permute.xlu0 %491
  %493 = vrot.lane.b32.xlu0 %v395, 96
  %v494 = vpop.permute.xlu0 %493
  %v527 = vmax.f32 %v241, %v432
  %v528 = vmax.f32 %v245, %v434
  %v529 = vmax.f32 %v251, %v436
  %v530 = vmax.f32 %v255, %v438
  %v531 = vmax.f32 %v261, %v440
  %v532 = vmax.f32 %v265, %v442
  %v533 = vmax.f32 %v271, %v444
  %v534 = vmax.f32 %v275, %v446
  %v535 = vmax.f32 %v281, %v448
  %v536 = vmax.f32 %v285, %v450
  %v537 = vmax.f32 %v291, %v452
  %v538 = vmax.f32 %v295, %v454
  %v539 = vmax.f32 %v301, %v456
  %v540 = vmax.f32 %v305, %v458
  %v541 = vmax.f32 %v311, %v460
  %v542 = vmax.f32 %v315, %v462
  %v543 = vmax.f32 %v321, %v464
  %v544 = vmax.f32 %v325, %v466
  %v545 = vmax.f32 %v331, %v468
  %v546 = vmax.f32 %v335, %v470
  %v547 = vmax.f32 %v341, %v472
  %v548 = vmax.f32 %v345, %v474
  %v549 = vmax.f32 %v351, %v476
  %v550 = vmax.f32 %v355, %v478
  %v551 = vmax.f32 %v361, %v480
  %v552 = vmax.f32 %v365, %v482
  %v553 = vmax.f32 %v371, %v484
  %v554 = vmax.f32 %v375, %v486
  %v555 = vmax.f32 %v381, %v488
  %v556 = vmax.f32 %v385, %v490
  %v557 = vmax.f32 %v391, %v492
  %v558 = vmax.f32 %v395, %v494
  %591 = vrot.lane.b32.xlu0 %v243, 96
  %v592 = vpop.permute.xlu0 %591
  %593 = vrot.lane.b32.xlu0 %v247, 96
  %v594 = vpop.permute.xlu0 %593
  %595 = vrot.lane.b32.xlu0 %v253, 96
  %v596 = vpop.permute.xlu0 %595
  %597 = vrot.lane.b32.xlu0 %v257, 96
  %v598 = vpop.permute.xlu0 %597
  %599 = vrot.lane.b32.xlu0 %v263, 96
  %v600 = vpop.permute.xlu0 %599
  %601 = vrot.lane.b32.xlu0 %v267, 96
  %v602 = vpop.permute.xlu0 %601
  %603 = vrot.lane.b32.xlu0 %v273, 96
  %v604 = vpop.permute.xlu0 %603
  %605 = vrot.lane.b32.xlu0 %v277, 96
  %v606 = vpop.permute.xlu0 %605
  %607 = vrot.lane.b32.xlu0 %v283, 96
  %v608 = vpop.permute.xlu0 %607
  %609 = vrot.lane.b32.xlu0 %v287, 96
  %v610 = vpop.permute.xlu0 %609
  %611 = vrot.lane.b32.xlu0 %v293, 96
  %v612 = vpop.permute.xlu0 %611
  %613 = vrot.lane.b32.xlu0 %v297, 96
  %v614 = vpop.permute.xlu0 %613
  %615 = vrot.lane.b32.xlu0 %v303, 96
  %v616 = vpop.permute.xlu0 %615
  %617 = vrot.lane.b32.xlu0 %v307, 96
  %v618 = vpop.permute.xlu0 %617
  %619 = vrot.lane.b32.xlu0 %v313, 96
  %v620 = vpop.permute.xlu0 %619
  %621 = vrot.lane.b32.xlu0 %v317, 96
  %v622 = vpop.permute.xlu0 %621
  %623 = vrot.lane.b32.xlu0 %v323, 96
  %v624 = vpop.permute.xlu0 %623
  %625 = vrot.lane.b32.xlu0 %v327, 96
  %v626 = vpop.permute.xlu0 %625
  %627 = vrot.lane.b32.xlu0 %v333, 96
  %v628 = vpop.permute.xlu0 %627
  %629 = vrot.lane.b32.xlu0 %v337, 96
  %v630 = vpop.permute.xlu0 %629
  %631 = vrot.lane.b32.xlu0 %v343, 96
  %v632 = vpop.permute.xlu0 %631
  %633 = vrot.lane.b32.xlu0 %v347, 96
  %v634 = vpop.permute.xlu0 %633
  %635 = vrot.lane.b32.xlu0 %v353, 96
  %v636 = vpop.permute.xlu0 %635
  %637 = vrot.lane.b32.xlu0 %v357, 96
  %v638 = vpop.permute.xlu0 %637
  %639 = vrot.lane.b32.xlu0 %v363, 96
  %v640 = vpop.permute.xlu0 %639
  %641 = vrot.lane.b32.xlu0 %v367, 96
  %v642 = vpop.permute.xlu0 %641
  %643 = vrot.lane.b32.xlu0 %v373, 96
  %v644 = vpop.permute.xlu0 %643
  %645 = vrot.lane.b32.xlu0 %v377, 96
  %v646 = vpop.permute.xlu0 %645
  %647 = vrot.lane.b32.xlu0 %v383, 96
  %v648 = vpop.permute.xlu0 %647
  %649 = vrot.lane.b32.xlu0 %v387, 96
  %v650 = vpop.permute.xlu0 %649
  %651 = vrot.lane.b32.xlu0 %v393, 96
  %v652 = vpop.permute.xlu0 %651
  %653 = vrot.lane.b32.xlu0 %v397, 96
  %v654 = vpop.permute.xlu0 %653
  %v687 = vmax.f32 %v243, %v592
  %v688 = vmax.f32 %v247, %v594
  %v689 = vmax.f32 %v253, %v596
  %v690 = vmax.f32 %v257, %v598
  %v691 = vmax.f32 %v263, %v600
  %v692 = vmax.f32 %v267, %v602
  %v693 = vmax.f32 %v273, %v604
  %v694 = vmax.f32 %v277, %v606
  %v695 = vmax.f32 %v283, %v608
  %v696 = vmax.f32 %v287, %v610
  %v697 = vmax.f32 %v293, %v612
  %v698 = vmax.f32 %v297, %v614
  %v699 = vmax.f32 %v303, %v616
  %v700 = vmax.f32 %v307, %v618
  %v701 = vmax.f32 %v313, %v620
  %v702 = vmax.f32 %v317, %v622
  %v703 = vmax.f32 %v323, %v624
  %v704 = vmax.f32 %v327, %v626
  %v705 = vmax.f32 %v333, %v628
  %v706 = vmax.f32 %v337, %v630
  %v707 = vmax.f32 %v343, %v632
  %v708 = vmax.f32 %v347, %v634
  %v709 = vmax.f32 %v353, %v636
  %v710 = vmax.f32 %v357, %v638
  %v711 = vmax.f32 %v363, %v640
  %v712 = vmax.f32 %v367, %v642
  %v713 = vmax.f32 %v373, %v644
  %v714 = vmax.f32 %v377, %v646
  %v715 = vmax.f32 %v383, %v648
  %v716 = vmax.f32 %v387, %v650
  %v717 = vmax.f32 %v393, %v652
  %v718 = vmax.f32 %v397, %v654
  %751 = vrot.lane.b32.xlu0 %v527, 64
  %v752 = vpop.permute.xlu0 %751
  %753 = vrot.lane.b32.xlu0 %v528, 64
  %v754 = vpop.permute.xlu0 %753
  %755 = vrot.lane.b32.xlu0 %v529, 64
  %v756 = vpop.permute.xlu0 %755
  %757 = vrot.lane.b32.xlu0 %v530, 64
  %v758 = vpop.permute.xlu0 %757
  %759 = vrot.lane.b32.xlu0 %v531, 64
  %v760 = vpop.permute.xlu0 %759
  %761 = vrot.lane.b32.xlu0 %v532, 64
  %v762 = vpop.permute.xlu0 %761
  %763 = vrot.lane.b32.xlu0 %v533, 64
  %v764 = vpop.permute.xlu0 %763
  %765 = vrot.lane.b32.xlu0 %v534, 64
  %v766 = vpop.permute.xlu0 %765
  %767 = vrot.lane.b32.xlu0 %v535, 64
  %v768 = vpop.permute.xlu0 %767
  %769 = vrot.lane.b32.xlu0 %v536, 64
  %v770 = vpop.permute.xlu0 %769
  %771 = vrot.lane.b32.xlu0 %v537, 64
  %v772 = vpop.permute.xlu0 %771
  %773 = vrot.lane.b32.xlu0 %v538, 64
  %v774 = vpop.permute.xlu0 %773
  %775 = vrot.lane.b32.xlu0 %v539, 64
  %v776 = vpop.permute.xlu0 %775
  %777 = vrot.lane.b32.xlu0 %v540, 64
  %v778 = vpop.permute.xlu0 %777
  %779 = vrot.lane.b32.xlu0 %v541, 64
  %v780 = vpop.permute.xlu0 %779
  %781 = vrot.lane.b32.xlu0 %v542, 64
  %v782 = vpop.permute.xlu0 %781
  %783 = vrot.lane.b32.xlu0 %v543, 64
  %v784 = vpop.permute.xlu0 %783
  %785 = vrot.lane.b32.xlu0 %v544, 64
  %v786 = vpop.permute.xlu0 %785
  %787 = vrot.lane.b32.xlu0 %v545, 64
  %v788 = vpop.permute.xlu0 %787
  %789 = vrot.lane.b32.xlu0 %v546, 64
  %v790 = vpop.permute.xlu0 %789
  %791 = vrot.lane.b32.xlu0 %v547, 64
  %v792 = vpop.permute.xlu0 %791
  %793 = vrot.lane.b32.xlu0 %v548, 64
  %v794 = vpop.permute.xlu0 %793
  %795 = vrot.lane.b32.xlu0 %v549, 64
  %v796 = vpop.permute.xlu0 %795
  %797 = vrot.lane.b32.xlu0 %v550, 64
  %v798 = vpop.permute.xlu0 %797
  %799 = vrot.lane.b32.xlu0 %v551, 64
  %v800 = vpop.permute.xlu0 %799
  %801 = vrot.lane.b32.xlu0 %v552, 64
  %v802 = vpop.permute.xlu0 %801
  %803 = vrot.lane.b32.xlu0 %v553, 64
  %v804 = vpop.permute.xlu0 %803
  %805 = vrot.lane.b32.xlu0 %v554, 64
  %v806 = vpop.permute.xlu0 %805
  %807 = vrot.lane.b32.xlu0 %v555, 64
  %v808 = vpop.permute.xlu0 %807
  %809 = vrot.lane.b32.xlu0 %v556, 64
  %v810 = vpop.permute.xlu0 %809
  %811 = vrot.lane.b32.xlu0 %v557, 64
  %v812 = vpop.permute.xlu0 %811
  %813 = vrot.lane.b32.xlu0 %v558, 64
  %v814 = vpop.permute.xlu0 %813
  %v847 = vmax.f32 %v527, %v752
  %v848 = vmax.f32 %v528, %v754
  %v849 = vmax.f32 %v529, %v756
  %v850 = vmax.f32 %v530, %v758
  %v851 = vmax.f32 %v531, %v760
  %v852 = vmax.f32 %v532, %v762
  %v853 = vmax.f32 %v533, %v764
  %v854 = vmax.f32 %v534, %v766
  %v855 = vmax.f32 %v535, %v768
  %v856 = vmax.f32 %v536, %v770
  %v857 = vmax.f32 %v537, %v772
  %v858 = vmax.f32 %v538, %v774
  %v859 = vmax.f32 %v539, %v776
  %v860 = vmax.f32 %v540, %v778
  %v861 = vmax.f32 %v541, %v780
  %v862 = vmax.f32 %v542, %v782
  %v863 = vmax.f32 %v543, %v784
  %v864 = vmax.f32 %v544, %v786
  %v865 = vmax.f32 %v545, %v788
  %v866 = vmax.f32 %v546, %v790
  %v867 = vmax.f32 %v547, %v792
  %v868 = vmax.f32 %v548, %v794
  %v869 = vmax.f32 %v549, %v796
  %v870 = vmax.f32 %v550, %v798
  %v871 = vmax.f32 %v551, %v800
  %v872 = vmax.f32 %v552, %v802
  %v873 = vmax.f32 %v553, %v804
  %v874 = vmax.f32 %v554, %v806
  %v875 = vmax.f32 %v555, %v808
  %v876 = vmax.f32 %v556, %v810
  %v877 = vmax.f32 %v557, %v812
  %v878 = vmax.f32 %v558, %v814
  %879 = vrot.lane.b32.xlu0 %v243, 64
  %v880 = vpop.permute.xlu0 %879
  %881 = vrot.lane.b32.xlu0 %v247, 64
  %v882 = vpop.permute.xlu0 %881
  %883 = vrot.lane.b32.xlu0 %v253, 64
  %v884 = vpop.permute.xlu0 %883
  %885 = vrot.lane.b32.xlu0 %v257, 64
  %v886 = vpop.permute.xlu0 %885
  %887 = vrot.lane.b32.xlu0 %v263, 64
  %v888 = vpop.permute.xlu0 %887
  %889 = vrot.lane.b32.xlu0 %v267, 64
  %v890 = vpop.permute.xlu0 %889
  %891 = vrot.lane.b32.xlu0 %v273, 64
  %v892 = vpop.permute.xlu0 %891
  %893 = vrot.lane.b32.xlu0 %v277, 64
  %v894 = vpop.permute.xlu0 %893
  %895 = vrot.lane.b32.xlu0 %v283, 64
  %v896 = vpop.permute.xlu0 %895
  %897 = vrot.lane.b32.xlu0 %v287, 64
  %v898 = vpop.permute.xlu0 %897
  %899 = vrot.lane.b32.xlu0 %v293, 64
  %v900 = vpop.permute.xlu0 %899
  %901 = vrot.lane.b32.xlu0 %v297, 64
  %v902 = vpop.permute.xlu0 %901
  %903 = vrot.lane.b32.xlu0 %v303, 64
  %v904 = vpop.permute.xlu0 %903
  %905 = vrot.lane.b32.xlu0 %v307, 64
  %v906 = vpop.permute.xlu0 %905
  %907 = vrot.lane.b32.xlu0 %v313, 64
  %v908 = vpop.permute.xlu0 %907
  %909 = vrot.lane.b32.xlu0 %v317, 64
  %v910 = vpop.permute.xlu0 %909
  %911 = vrot.lane.b32.xlu0 %v323, 64
  %v912 = vpop.permute.xlu0 %911
  %913 = vrot.lane.b32.xlu0 %v327, 64
  %v914 = vpop.permute.xlu0 %913
  %915 = vrot.lane.b32.xlu0 %v333, 64
  %v916 = vpop.permute.xlu0 %915
  %917 = vrot.lane.b32.xlu0 %v337, 64
  %v918 = vpop.permute.xlu0 %917
  %919 = vrot.lane.b32.xlu0 %v343, 64
  %v920 = vpop.permute.xlu0 %919
  %921 = vrot.lane.b32.xlu0 %v347, 64
  %v922 = vpop.permute.xlu0 %921
  %923 = vrot.lane.b32.xlu0 %v353, 64
  %v924 = vpop.permute.xlu0 %923
  %925 = vrot.lane.b32.xlu0 %v357, 64
  %v926 = vpop.permute.xlu0 %925
  %927 = vrot.lane.b32.xlu0 %v363, 64
  %v928 = vpop.permute.xlu0 %927
  %929 = vrot.lane.b32.xlu0 %v367, 64
  %v930 = vpop.permute.xlu0 %929
  %931 = vrot.lane.b32.xlu0 %v373, 64
  %v932 = vpop.permute.xlu0 %931
  %933 = vrot.lane.b32.xlu0 %v377, 64
  %v934 = vpop.permute.xlu0 %933
  %935 = vrot.lane.b32.xlu0 %v383, 64
  %v936 = vpop.permute.xlu0 %935
  %937 = vrot.lane.b32.xlu0 %v387, 64
  %v938 = vpop.permute.xlu0 %937
  %939 = vrot.lane.b32.xlu0 %v393, 64
  %v940 = vpop.permute.xlu0 %939
  %941 = vrot.lane.b32.xlu0 %v397, 64
  %v942 = vpop.permute.xlu0 %941
  %v975 = vmax.f32 %v687, %v880
  %v976 = vmax.f32 %v688, %v882
  %v977 = vmax.f32 %v689, %v884
  %v978 = vmax.f32 %v690, %v886
  %v979 = vmax.f32 %v691, %v888
  %v980 = vmax.f32 %v692, %v890
  %v981 = vmax.f32 %v693, %v892
  %v982 = vmax.f32 %v694, %v894
  %v983 = vmax.f32 %v695, %v896
  %v984 = vmax.f32 %v696, %v898
  %v985 = vmax.f32 %v697, %v900
  %v986 = vmax.f32 %v698, %v902
  %v987 = vmax.f32 %v699, %v904
  %v988 = vmax.f32 %v700, %v906
  %v989 = vmax.f32 %v701, %v908
  %v990 = vmax.f32 %v702, %v910
  %v991 = vmax.f32 %v703, %v912
  %v992 = vmax.f32 %v704, %v914
  %v993 = vmax.f32 %v705, %v916
  %v994 = vmax.f32 %v706, %v918
  %v995 = vmax.f32 %v707, %v920
  %v996 = vmax.f32 %v708, %v922
  %v997 = vmax.f32 %v709, %v924
  %v998 = vmax.f32 %v710, %v926
  %v999 = vmax.f32 %v711, %v928
  %v1000 = vmax.f32 %v712, %v930
  %v1001 = vmax.f32 %v713, %v932
  %v1002 = vmax.f32 %v714, %v934
  %v1003 = vmax.f32 %v715, %v936
  %v1004 = vmax.f32 %v716, %v938
  %v1005 = vmax.f32 %v717, %v940
  %v1006 = vmax.f32 %v718, %v942
  %v1007 = vmax.f32 %v847, %v975
  %v1008 = vmax.f32 %v848, %v976
  %v1009 = vmax.f32 %v849, %v977
  %v1010 = vmax.f32 %v850, %v978
  %v1011 = vmax.f32 %v851, %v979
  %v1012 = vmax.f32 %v852, %v980
  %v1013 = vmax.f32 %v853, %v981
  %v1014 = vmax.f32 %v854, %v982
  %v1015 = vmax.f32 %v855, %v983
  %v1016 = vmax.f32 %v856, %v984
  %v1017 = vmax.f32 %v857, %v985
  %v1018 = vmax.f32 %v858, %v986
  %v1019 = vmax.f32 %v859, %v987
  %v1020 = vmax.f32 %v860, %v988
  %v1021 = vmax.f32 %v861, %v989
  %v1022 = vmax.f32 %v862, %v990
  %v1023 = vmax.f32 %v863, %v991
  %v1024 = vmax.f32 %v864, %v992
  %v1025 = vmax.f32 %v865, %v993
  %v1026 = vmax.f32 %v866, %v994
  %v1027 = vmax.f32 %v867, %v995
  %v1028 = vmax.f32 %v868, %v996
  %v1029 = vmax.f32 %v869, %v997
  %v1030 = vmax.f32 %v870, %v998
  %v1031 = vmax.f32 %v871, %v999
  %v1032 = vmax.f32 %v872, %v1000
  %v1033 = vmax.f32 %v873, %v1001
  %v1034 = vmax.f32 %v874, %v1002
  %v1035 = vmax.f32 %v875, %v1003
  %v1036 = vmax.f32 %v876, %v1004
  %v1037 = vmax.f32 %v877, %v1005
  %v1038 = vmax.f32 %v878, %v1006
  %v1039 = vld [vmem:[%s2] sm:$0x1]
  %v1041 = vlaneseq
  %v1042 = vshrl.u32 %v1041, 7
  %v1043 = vsub.s32 0, %v1042
  %v1044 = vrot.slane %v1039, %v1043
  %v1046 = vadd.f32 %v1007, %v1044
  %v1047 = vadd.f32 %v1008, %v1044
  %v1048 = vadd.f32 %v1009, %v1044
  %v1049 = vadd.f32 %v1010, %v1044
  %v1050 = vadd.f32 %v1011, %v1044
  %v1051 = vadd.f32 %v1012, %v1044
  %v1052 = vadd.f32 %v1013, %v1044
  %v1053 = vadd.f32 %v1014, %v1044
  %v1054 = vadd.f32 %v1015, %v1044
  %v1055 = vadd.f32 %v1016, %v1044
  %v1056 = vadd.f32 %v1017, %v1044
  %v1057 = vadd.f32 %v1018, %v1044
  %v1058 = vadd.f32 %v1019, %v1044
  %v1059 = vadd.f32 %v1020, %v1044
  %v1060 = vadd.f32 %v1021, %v1044
  %v1061 = vadd.f32 %v1022, %v1044
  %v1062 = vadd.f32 %v1023, %v1044
  %v1063 = vadd.f32 %v1024, %v1044
  %v1064 = vadd.f32 %v1025, %v1044
  %v1065 = vadd.f32 %v1026, %v1044
  %v1066 = vadd.f32 %v1027, %v1044
  %v1067 = vadd.f32 %v1028, %v1044
  %v1068 = vadd.f32 %v1029, %v1044
  %v1069 = vadd.f32 %v1030, %v1044
  %v1070 = vadd.f32 %v1031, %v1044
  %v1071 = vadd.f32 %v1032, %v1044
  %v1072 = vadd.f32 %v1033, %v1044
  %v1073 = vadd.f32 %v1034, %v1044
  %v1074 = vadd.f32 %v1035, %v1044
  %v1075 = vadd.f32 %v1036, %v1044
  %v1076 = vadd.f32 %v1037, %v1044
  %v1077 = vadd.f32 %v1038, %v1044
  %v1078 = vmax.f32 %v1046, 0.0
  %v1079 = vmax.f32 %v1047, 0.0
  %v1080 = vmax.f32 %v1048, 0.0
  %v1081 = vmax.f32 %v1049, 0.0
  %v1082 = vmax.f32 %v1050, 0.0
  %v1083 = vmax.f32 %v1051, 0.0
  %v1084 = vmax.f32 %v1052, 0.0
  %v1085 = vmax.f32 %v1053, 0.0
  %v1086 = vmax.f32 %v1054, 0.0
  %v1087 = vmax.f32 %v1055, 0.0
  %v1088 = vmax.f32 %v1056, 0.0
  %v1089 = vmax.f32 %v1057, 0.0
  %v1090 = vmax.f32 %v1058, 0.0
  %v1091 = vmax.f32 %v1059, 0.0
  %v1092 = vmax.f32 %v1060, 0.0
  %v1093 = vmax.f32 %v1061, 0.0
  %v1094 = vmax.f32 %v1062, 0.0
  %v1095 = vmax.f32 %v1063, 0.0
  %v1096 = vmax.f32 %v1064, 0.0
  %v1097 = vmax.f32 %v1065, 0.0
  %v1098 = vmax.f32 %v1066, 0.0
  %v1099 = vmax.f32 %v1067, 0.0
  %v1100 = vmax.f32 %v1068, 0.0
  %v1101 = vmax.f32 %v1069, 0.0
  %v1102 = vmax.f32 %v1070, 0.0
  %v1103 = vmax.f32 %v1071, 0.0
  %v1104 = vmax.f32 %v1072, 0.0
  %v1105 = vmax.f32 %v1073, 0.0
  %v1106 = vmax.f32 %v1074, 0.0
  %v1107 = vmax.f32 %v1075, 0.0
  %v1108 = vmax.f32 %v1076, 0.0
  %v1109 = vmax.f32 %v1077, 0.0
  %v1110 = vpack.c.bf16 %v1079, %v1078
  %v1111 = vpack.c.bf16 %v1081, %v1080
  %v1112 = vpack.c.bf16 %v1083, %v1082
  %v1113 = vpack.c.bf16 %v1085, %v1084
  %v1114 = vpack.c.bf16 %v1087, %v1086
  %v1115 = vpack.c.bf16 %v1089, %v1088
  %v1116 = vpack.c.bf16 %v1091, %v1090
  %v1117 = vpack.c.bf16 %v1093, %v1092
  %v1118 = vpack.c.bf16 %v1095, %v1094
  %v1119 = vpack.c.bf16 %v1097, %v1096
  %v1120 = vpack.c.bf16 %v1099, %v1098
  %v1121 = vpack.c.bf16 %v1101, %v1100
  %v1122 = vpack.c.bf16 %v1103, %v1102
  %v1123 = vpack.c.bf16 %v1105, %v1104
  %v1124 = vpack.c.bf16 %v1107, %v1106
  %v1125 = vpack.c.bf16 %v1109, %v1108
  %v1126 = vld [vmem:[%s3] sm:$0xf]
  %v1127 = vld [vmem:[%s3 + $0x4] sm:$0xf]
  %v1128 = vld [vmem:[%s3 + $0x8] sm:$0xf]
  %v1129 = vld [vmem:[%s3 + $0xc] sm:$0xf]
  %v1130 = vld [vmem:[%s4] sm:$0x1]
  %v1132 = vlaneseq
  %v1133 = vshrl.u32 %v1132, 7
  %v1134 = vsub.s32 0, %v1133
  %v1135 = vrot.slane %v1130, %v1134
  %v1141 = vunpack.c.l.b16 %v1126
  %v1142 = vunpack.c.l.b16 %v1127
  %v1143 = vunpack.c.l.b16 %v1128
  %v1144 = vunpack.c.l.b16 %v1129
  %v1145 = vpack.c.b16 %v1142, %v1141
  %v1146 = vpack.c.b16 %v1144, %v1143
  %v1150 = vsel %vm157, %v1110, 0
  %v1153 = vsel %vm157, %v1111, 0
  %v1156 = vsel %vm157, %v1112, 0
  %v1159 = vsel %vm157, %v1113, 0
  %v1162 = vsel %vm157, %v1114, 0
  %v1165 = vsel %vm157, %v1115, 0
  %v1168 = vsel %vm157, %v1116, 0
  %v1171 = vsel %vm157, %v1117, 0
  %v1174 = vsel %vm157, %v1118, 0
  %v1177 = vsel %vm157, %v1119, 0
  %v1180 = vsel %vm157, %v1120, 0
  %v1183 = vsel %vm157, %v1121, 0
  %v1186 = vsel %vm157, %v1122, 0
  %v1189 = vsel %vm157, %v1123, 0
  %v1192 = vsel %vm157, %v1124, 0
  %v1195 = vsel %vm157, %v1125, 0
  %1197 = vmatprep.subr.bf16.mxu0 0
  %1198 = vmatpush1.bf16.msra.mxu0 %v1145
  %1199 = vmatprep.subr.bf16.mxu0 0
  %1200 = vmatpush1.bf16.msra.mxu0 %v1146
  %1201 = vmatprep.subr.bf16.mxu0 0
  %1202 = vmatpush1.bf16.msra.mxu0 0
  %1203 = vmatprep.subr.bf16.mxu0 0
  %1204 = vmatpush1.bf16.msra.mxu0 0
  %1205 = vmatprep.subr.bf16.mxu0 0
  %1206 = vmatpush1.bf16.msra.mxu0 0
  %1207 = vmatprep.subr.bf16.mxu0 0
  %1208 = vmatpush1.bf16.msra.mxu0 0
  %1209 = vmatprep.subr.bf16.mxu0 0
  %1210 = vmatpush1.bf16.msra.mxu0 0
  %1211 = vmatprep.subr.bf16.mxu0 0
  %1212 = vmatpush1.bf16.msra.mxu0 0
  %1213 = vmatprep.subr.bf16.mxu0 0
  %1214 = vmatpush1.bf16.msra.mxu0 0
  %1215 = vmatprep.subr.bf16.mxu0 0
  %1216 = vmatpush1.bf16.msra.mxu0 0
  %1217 = vmatprep.subr.bf16.mxu0 0
  %1218 = vmatpush1.bf16.msra.mxu0 0
  %1219 = vmatprep.subr.bf16.mxu0 0
  %1220 = vmatpush1.bf16.msra.mxu0 0
  %1221 = vmatprep.subr.bf16.mxu0 0
  %1222 = vmatpush1.bf16.msra.mxu0 0
  %1223 = vmatprep.subr.bf16.mxu0 0
  %1224 = vmatpush1.bf16.msra.mxu0 0
  %1225 = vmatprep.subr.bf16.mxu0 0
  %1226 = vmatpush1.bf16.msra.mxu0 0
  %1227 = vmatprep.subr.bf16.mxu0 0
  %1228 = vmatpush1.bf16.msra.mxu0 0
  %1229 = vmatprep.mubr.bf16.mxu0 0
  %1230 = vmatmul.mubr.bf16.gmra.mrb[0].mxu0 %v1150
  %v1231 = vpop.f32.mrb[0].mxu0
  %v1232 = vadd.f32 %v1135, %v1231
  %v1233 = vpop.f32.mrb[0].mxu0
  %v1234 = vpop.f32.mrb[0].mxu0
  %v1235 = vadd.f32 %v1135, %v1234
  %v1236 = vpop.f32.mrb[0].mxu0
  %1237 = vmatprep.mubr.bf16.mxu0 0
  %1238 = vmatmul.mubr.bf16.gmra.mrb[0].mxu0 %v1153
  %v1239 = vpop.f32.mrb[0].mxu0
  %v1240 = vadd.f32 %v1135, %v1239
  %v1241 = vpop.f32.mrb[0].mxu0
  %v1242 = vpop.f32.mrb[0].mxu0
  %v1243 = vadd.f32 %v1135, %v1242
  %v1244 = vpop.f32.mrb[0].mxu0
  %1245 = vmatprep.mubr.bf16.mxu0 0
  %1246 = vmatmul.mubr.bf16.gmra.mrb[0].mxu0 %v1156
  %v1247 = vpop.f32.mrb[0].mxu0
  %v1248 = vadd.f32 %v1135, %v1247
  %v1249 = vpop.f32.mrb[0].mxu0
  %v1250 = vpop.f32.mrb[0].mxu0
  %v1251 = vadd.f32 %v1135, %v1250
  %v1252 = vpop.f32.mrb[0].mxu0
  %1253 = vmatprep.mubr.bf16.mxu0 0
  %1254 = vmatmul.mubr.bf16.gmra.mrb[0].mxu0 %v1159
  %v1255 = vpop.f32.mrb[0].mxu0
  %v1256 = vadd.f32 %v1135, %v1255
  %v1257 = vpop.f32.mrb[0].mxu0
  %v1258 = vpop.f32.mrb[0].mxu0
  %v1259 = vadd.f32 %v1135, %v1258
  %v1260 = vpop.f32.mrb[0].mxu0
  %1261 = vmatprep.mubr.bf16.mxu0 0
  %1262 = vmatmul.mubr.bf16.gmra.mrb[0].mxu0 %v1162
  %v1263 = vpop.f32.mrb[0].mxu0
  %v1264 = vadd.f32 %v1135, %v1263
  %v1265 = vpop.f32.mrb[0].mxu0
  %v1266 = vpop.f32.mrb[0].mxu0
  %v1267 = vadd.f32 %v1135, %v1266
  %v1268 = vpop.f32.mrb[0].mxu0
  %1269 = vmatprep.mubr.bf16.mxu0 0
  %1270 = vmatmul.mubr.bf16.gmra.mrb[0].mxu0 %v1165
  %v1271 = vpop.f32.mrb[0].mxu0
  %v1272 = vadd.f32 %v1135, %v1271
  %v1273 = vpop.f32.mrb[0].mxu0
  %v1274 = vpop.f32.mrb[0].mxu0
  %v1275 = vadd.f32 %v1135, %v1274
  %v1276 = vpop.f32.mrb[0].mxu0
  %1277 = vmatprep.mubr.bf16.mxu0 0
  %1278 = vmatmul.mubr.bf16.gmra.mrb[0].mxu0 %v1168
  %v1279 = vpop.f32.mrb[0].mxu0
  %v1280 = vadd.f32 %v1135, %v1279
  %v1281 = vpop.f32.mrb[0].mxu0
  %v1282 = vpop.f32.mrb[0].mxu0
  %v1283 = vadd.f32 %v1135, %v1282
  %v1284 = vpop.f32.mrb[0].mxu0
  %1285 = vmatprep.mubr.bf16.mxu0 0
  %1286 = vmatmul.mubr.bf16.gmra.mrb[0].mxu0 %v1171
  %v1287 = vpop.f32.mrb[0].mxu0
  %v1288 = vadd.f32 %v1135, %v1287
  %v1289 = vpop.f32.mrb[0].mxu0
  %v1290 = vpop.f32.mrb[0].mxu0
  %v1291 = vadd.f32 %v1135, %v1290
  %v1292 = vpop.f32.mrb[0].mxu0
  %1293 = vmatprep.mubr.bf16.mxu0 0
  %1294 = vmatmul.mubr.bf16.gmra.mrb[0].mxu0 %v1174
  %v1295 = vpop.f32.mrb[0].mxu0
  %v1296 = vadd.f32 %v1135, %v1295
  %v1297 = vpop.f32.mrb[0].mxu0
  %v1298 = vpop.f32.mrb[0].mxu0
  %v1299 = vadd.f32 %v1135, %v1298
  %v1300 = vpop.f32.mrb[0].mxu0
  %1301 = vmatprep.mubr.bf16.mxu0 0
  %1302 = vmatmul.mubr.bf16.gmra.mrb[0].mxu0 %v1177
  %v1303 = vpop.f32.mrb[0].mxu0
  %v1304 = vadd.f32 %v1135, %v1303
  %v1305 = vpop.f32.mrb[0].mxu0
  %v1306 = vpop.f32.mrb[0].mxu0
  %v1307 = vadd.f32 %v1135, %v1306
  %v1308 = vpop.f32.mrb[0].mxu0
  %1309 = vmatprep.mubr.bf16.mxu0 0
  %1310 = vmatmul.mubr.bf16.gmra.mrb[0].mxu0 %v1180
  %v1311 = vpop.f32.mrb[0].mxu0
  %v1312 = vadd.f32 %v1135, %v1311
  %v1313 = vpop.f32.mrb[0].mxu0
  %v1314 = vpop.f32.mrb[0].mxu0
  %v1315 = vadd.f32 %v1135, %v1314
  %v1316 = vpop.f32.mrb[0].mxu0
  %1317 = vmatprep.mubr.bf16.mxu0 0
  %1318 = vmatmul.mubr.bf16.gmra.mrb[0].mxu0 %v1183
  %v1319 = vpop.f32.mrb[0].mxu0
  %v1320 = vadd.f32 %v1135, %v1319
  %v1321 = vpop.f32.mrb[0].mxu0
  %v1322 = vpop.f32.mrb[0].mxu0
  %v1323 = vadd.f32 %v1135, %v1322
  %v1324 = vpop.f32.mrb[0].mxu0
  %1325 = vmatprep.mubr.bf16.mxu0 0
  %1326 = vmatmul.mubr.bf16.gmra.mrb[0].mxu0 %v1186
  %v1327 = vpop.f32.mrb[0].mxu0
  %v1328 = vadd.f32 %v1135, %v1327
  %v1329 = vpop.f32.mrb[0].mxu0
  %v1330 = vpop.f32.mrb[0].mxu0
  %v1331 = vadd.f32 %v1135, %v1330
  %v1332 = vpop.f32.mrb[0].mxu0
  %1333 = vmatprep.mubr.bf16.mxu0 0
  %1334 = vmatmul.mubr.bf16.gmra.mrb[0].mxu0 %v1189
  %v1335 = vpop.f32.mrb[0].mxu0
  %v1336 = vadd.f32 %v1135, %v1335
  %v1337 = vpop.f32.mrb[0].mxu0
  %v1338 = vpop.f32.mrb[0].mxu0
  %v1339 = vadd.f32 %v1135, %v1338
  %v1340 = vpop.f32.mrb[0].mxu0
  %1341 = vmatprep.mubr.bf16.mxu0 0
  %1342 = vmatmul.mubr.bf16.gmra.mrb[0].mxu0 %v1192
  %v1343 = vpop.f32.mrb[0].mxu0
  %v1344 = vadd.f32 %v1135, %v1343
  %v1345 = vpop.f32.mrb[0].mxu0
  %v1346 = vpop.f32.mrb[0].mxu0
  %v1347 = vadd.f32 %v1135, %v1346
  %v1348 = vpop.f32.mrb[0].mxu0
  %1349 = vmatprep.mubr.bf16.mxu0 0
  %1350 = vmatmul.mubr.bf16.gmra.mrb[0].mxu0 %v1195
  %v1351 = vpop.f32.mrb[0].mxu0
  %v1352 = vadd.f32 %v1135, %v1351
  %v1353 = vpop.f32.mrb[0].mxu0
  %v1354 = vpop.f32.mrb[0].mxu0
  %v1355 = vadd.f32 %v1135, %v1354
  %v1356 = vpop.f32.mrb[0].mxu0
  %1357 = vdwg.mxu0
  %vm1358 = vcmask 64512
  %1359 = vst.msk [vmem:[%s5] sm:$0xff] %vm1358, %v1232
  %1360 = vst.msk [vmem:[%s5 + $0x8] sm:$0xff] %vm1358, %v1235
  %1361 = vst.msk [vmem:[%s5 + $0x10] sm:$0xff] %vm1358, %v1240
  %1362 = vst.msk [vmem:[%s5 + $0x18] sm:$0xff] %vm1358, %v1243
  %1363 = vst.msk [vmem:[%s5 + $0x20] sm:$0xff] %vm1358, %v1248
  %1364 = vst.msk [vmem:[%s5 + $0x28] sm:$0xff] %vm1358, %v1251
  %1365 = vst.msk [vmem:[%s5 + $0x30] sm:$0xff] %vm1358, %v1256
  %1366 = vst.msk [vmem:[%s5 + $0x38] sm:$0xff] %vm1358, %v1259
  %1367 = vst.msk [vmem:[%s5 + $0x40] sm:$0xff] %vm1358, %v1264
  %1368 = vst.msk [vmem:[%s5 + $0x48] sm:$0xff] %vm1358, %v1267
  %1369 = vst.msk [vmem:[%s5 + $0x50] sm:$0xff] %vm1358, %v1272
  %1370 = vst.msk [vmem:[%s5 + $0x58] sm:$0xff] %vm1358, %v1275
  %1371 = vst.msk [vmem:[%s5 + $0x60] sm:$0xff] %vm1358, %v1280
  %1372 = vst.msk [vmem:[%s5 + $0x68] sm:$0xff] %vm1358, %v1283
  %1373 = vst.msk [vmem:[%s5 + $0x70] sm:$0xff] %vm1358, %v1288
  %1374 = vst.msk [vmem:[%s5 + $0x78] sm:$0xff] %vm1358, %v1291
  %1375 = vst.msk [vmem:[%s5 + $0x80] sm:$0xff] %vm1358, %v1296
  %1376 = vst.msk [vmem:[%s5 + $0x88] sm:$0xff] %vm1358, %v1299
  %1377 = vst.msk [vmem:[%s5 + $0x90] sm:$0xff] %vm1358, %v1304
  %1378 = vst.msk [vmem:[%s5 + $0x98] sm:$0xff] %vm1358, %v1307
  %1379 = vst.msk [vmem:[%s5 + $0xa0] sm:$0xff] %vm1358, %v1312
  %1380 = vst.msk [vmem:[%s5 + $0xa8] sm:$0xff] %vm1358, %v1315
  %1381 = vst.msk [vmem:[%s5 + $0xb0] sm:$0xff] %vm1358, %v1320
  %1382 = vst.msk [vmem:[%s5 + $0xb8] sm:$0xff] %vm1358, %v1323
  %1383 = vst.msk [vmem:[%s5 + $0xc0] sm:$0xff] %vm1358, %v1328
  %1384 = vst.msk [vmem:[%s5 + $0xc8] sm:$0xff] %vm1358, %v1331
  %1385 = vst.msk [vmem:[%s5 + $0xd0] sm:$0xff] %vm1358, %v1336
  %1386 = vst.msk [vmem:[%s5 + $0xd8] sm:$0xff] %vm1358, %v1339
  %1387 = vst.msk [vmem:[%s5 + $0xe0] sm:$0xff] %vm1358, %v1344
  %1388 = vst.msk [vmem:[%s5 + $0xe8] sm:$0xff] %vm1358, %v1347
  %1389 = vst.msk [vmem:[%s5 + $0xf0] sm:$0xff] %vm1358, %v1352
  %1390 = vst.msk [vmem:[%s5 + $0xf8] sm:$0xff] %vm1358, %v1355
  // Predicated region
  $region22: #{cnn_forward_batched.1} parent=0 // pred_check
    _
  $region23: #{cnn_forward_batched.1} parent=0 // pred_check_branch
    %1392 = sbr.rel (0) target = $region25
  $region24: #{cnn_forward_batched.1} parent=0 // pred_region
    _
  $region25: #{cnn_forward_batched.1} parent=0 // pred_fallthru
    _
  // Predicated region
  $region26: #{cnn_forward_batched.1} parent=0 // pred_check
    _
  $region27: #{cnn_forward_batched.1} parent=0 // pred_check_branch
    %1394 = sbr.rel (0) target = $region29
  $region28: #{cnn_forward_batched.1} parent=0 // pred_region
    _
  $region29: #{cnn_forward_batched.1} parent=0 // pred_fallthru
    _

</llo_original>
